<compile_context>
chip_gen: v6e
topology: v6e:2x2x1
jax: 0.10.0
libtpu: 0.0.40
codegen_flags: <defaults>
</compile_context>

<pallas_src>
import functools

import jax
import jax.numpy as jnp
from jax.experimental import pallas as pl
from jax.experimental.pallas import tpu as pltpu


def affine_sigmoid_kernel(xT_ref, w_ref, b_ref, o_ref):
    # xT_ref: (8, TB) f32   batch on lanes
    # w_ref : (8, 1)  f32   collapsed weights, resident across all grid steps
    # b_ref : (1, 1)  f32   collapsed bias
    # o_ref : (1, TB) f32   lane-dense output tile
    x = xT_ref[...]                                             # (8, TB)
    z = jnp.sum(x * w_ref[...], axis=0, keepdims=True) + b_ref[...]   # (1, TB)
    # sigmoid(z) == 0.5 * (tanh(z/2) + 1): single EUP op.
    o_ref[...] = (0.5 * (jnp.tanh(0.5 * z) + 1.0)).astype(o_ref.dtype)


@jax.jit
def mlp_forward(x, w_eff, b_eff):
    """x: (B, 8) f32 (PyTorch layout). Returns (B, 1) f32."""
    B = x.shape[0]
    # Lane tile: multiple of 128, capped at 512 rows-of-batch per grid step.
    tb = min(512, pl.cdiv(B, 128) * 128)
    b_pad = pl.cdiv(B, tb) * tb
    # Layout plumbing in XLA: batch on lanes, zero-pad to a tile multiple.
    xT = jnp.pad(x.T, ((0, 0), (0, b_pad - B)))                 # (8, b_pad)

    out = pl.pallas_call(
        affine_sigmoid_kernel,
        out_shape=jax.ShapeDtypeStruct((1, b_pad), jnp.float32),
        grid=(b_pad // tb,),
        in_specs=[
            pl.BlockSpec((8, tb), lambda i: (0, i)),   # x tile (pipelined per step)
            pl.BlockSpec((8, 1), lambda i: (0, 0)),    # W_eff resident in VMEM
            pl.BlockSpec((1, 1), lambda i: (0, 0)),    # b_eff resident in VMEM
        ],
        out_specs=pl.BlockSpec((1, tb), lambda i: (0, i)),
        compiler_params=pltpu.CompilerParams(
            dimension_semantics=("parallel",),         # shard batch across TCs (v7x)
        ),
    )(xT, w_eff, b_eff)

    return out[0, :B].reshape(B, 1)


def collapse_params(w1, b1, w2, b2, w3, b3):
    """Collapse three activation-free torch-layout Linears into one affine map.

    Torch layout: w_i is (out, in), b_i is (out,); y = x @ w.T + b.
    """
    w_eff = w1.T @ w2.T @ w3.T                          # (8, 1)
    b_eff = b1 @ w2.T @ w3.T + b2 @ w3.T + b3           # (1,)
    return w_eff, b_eff.reshape(1, 1)


def init_linear_params(key, in_features, out_features):
    # Matches torch.nn.Linear default init: U(-1/sqrt(in), 1/sqrt(in)), torch layout.
    kw, kb = jax.random.split(key)
    bound = 1.0 / float(jnp.sqrt(jnp.float32(in_features)))
    w = jax.random.uniform(kw, (out_features, in_features), jnp.float32, -bound, bound)
    b = jax.random.uniform(kb, (out_features,), jnp.float32, -bound, bound)
    return w, b


def ref_forward(x, p1, p2, p3):
    # Pure-JAX reference, mirroring the PyTorch module layer by layer.
    (w1, b1), (w2, b2), (w3, b3) = p1, p2, p3
    h = x @ w1.T + b1
    h = h @ w2.T + b2
    h = h @ w3.T + b3
    return jax.nn.sigmoid(h)


if __name__ == "__main__":
    key = jax.random.PRNGKey(0)
    k_x1, k_x2, k1, k2, k3 = jax.random.split(key, 5)

    p1 = init_linear_params(k1, 8, 6)
    p2 = init_linear_params(k2, 6, 4)
    p3 = init_linear_params(k3, 4, 1)
    w_eff, b_eff = collapse_params(*p1, *p2, *p3)

    # Small batch (single grid step) and a larger batch (exercises the grid).
    for B, kx in ((8, k_x1), (1024, k_x2)):
        x = jax.random.normal(kx, (B, 8), jnp.float32)
        out = jax.block_until_ready(mlp_forward(x, w_eff, b_eff))
        ref = ref_forward(x, p1, p2, p3)
        assert out.shape == (B, 1)
        assert jnp.allclose(out, ref, atol=1e-5, rtol=1e-5)

    print("KERNEL_OK")
</pallas_src>

<mosaic_0001>
module attributes {stable_mosaic.version = 11 : i64} {
  func.func @affine_sigmoid_kernel(%arg0: i32, %arg1: memref<8x128xf32, #tpu.memory_space<vmem>>, %arg2: memref<8x1xf32, #tpu.memory_space<vmem>>, %arg3: memref<1x1xf32, #tpu.memory_space<vmem>>, %arg4: memref<1x128xf32, #tpu.memory_space<vmem>>) attributes {dimension_semantics = [#tpu.dimension_semantics<parallel>], iteration_bounds = array<i64: 1>, scalar_prefetch = 0 : i64, scratch_operands = 0 : i64, tpu.core_type = #tpu.core_type<tc>, window_params = [{transform_indices = @transform_0, window_bounds = array<i64: 8, 128>}, {pipeline_mode = #tpu.pipeline_mode<synchronous>, transform_indices = @transform_1, window_bounds = array<i64: 8, 1>}, {pipeline_mode = #tpu.pipeline_mode<synchronous>, transform_indices = @transform_2, window_bounds = array<i64: 1, 1>}, {transform_indices = @transform_3, window_bounds = array<i64: 1, 128>}]} {
    %c0 = arith.constant 0 : index
    %c0_0 = arith.constant 0 : index
    %0 = vector.load %arg1[%c0, %c0_0] : memref<8x128xf32, #tpu.memory_space<vmem>>, vector<8x128xf32>
    %c0_1 = arith.constant 0 : index
    %c0_2 = arith.constant 0 : index
    %1 = vector.load %arg2[%c0_1, %c0_2] : memref<8x1xf32, #tpu.memory_space<vmem>>, vector<8x1xf32>
    %2 = vector.broadcast %1 : vector<8x1xf32> to vector<8x128xf32>
    %3 = arith.mulf %0, %2 : vector<8x128xf32>
    %cst = arith.constant dense<0.000000e+00> : vector<128xf32>
    %4 = vector.multi_reduction <add>, %3, %cst [0] : vector<8x128xf32> to vector<128xf32>
    %5 = vector.shape_cast %4 : vector<128xf32> to vector<1x128xf32>
    %c0_3 = arith.constant 0 : index
    %c0_4 = arith.constant 0 : index
    %6 = vector.load %arg3[%c0_3, %c0_4] : memref<1x1xf32, #tpu.memory_space<vmem>>, vector<1x1xf32>
    %7 = vector.broadcast %6 : vector<1x1xf32> to vector<1x128xf32>
    %8 = arith.addf %5, %7 : vector<1x128xf32>
    %cst_5 = arith.constant 5.000000e-01 : f32
    %9 = vector.broadcast %cst_5 : f32 to vector<1x128xf32>
    %10 = arith.mulf %9, %8 : vector<1x128xf32>
    %11 = math.tanh %10 : vector<1x128xf32>
    %cst_6 = arith.constant 1.000000e+00 : f32
    %12 = vector.broadcast %cst_6 : f32 to vector<1x128xf32>
    %13 = arith.addf %11, %12 : vector<1x128xf32>
    %cst_7 = arith.constant 5.000000e-01 : f32
    %14 = vector.broadcast %cst_7 : f32 to vector<1x128xf32>
    %15 = arith.mulf %14, %13 : vector<1x128xf32>
    %c0_8 = arith.constant 0 : index
    %c0_9 = arith.constant 0 : index
    %16 = vector.load %arg4[%c0_8, %c0_9] : memref<1x128xf32, #tpu.memory_space<vmem>>, vector<1x128xf32>
    tpu.vector_store %arg4[%c0_8, %c0_9], %15 {strides = array<i32>} : memref<1x128xf32, #tpu.memory_space<vmem>>, vector<1x128xf32>,
    return
  }
  func.func @transform_0(%arg0: i32) -> (i32, i32) {
    %c0_i32 = arith.constant 0 : i32
    %c0_i32_0 = arith.constant 0 : i32
    return %c0_i32, %arg0 : i32, i32
  }
  func.func @transform_1(%arg0: i32) -> (i32, i32) {
    %c0_i32 = arith.constant 0 : i32
    %c0_i32_0 = arith.constant 0 : i32
    %c0_i32_1 = arith.constant 0 : i32
    return %c0_i32, %c0_i32_0 : i32, i32
  }
  func.func @transform_2(%arg0: i32) -> (i32, i32) {
    %c0_i32 = arith.constant 0 : i32
    %c0_i32_0 = arith.constant 0 : i32
    %c0_i32_1 = arith.constant 0 : i32
    return %c0_i32, %c0_i32_0 : i32, i32
  }
  func.func @transform_3(%arg0: i32) -> (i32, i32) {
    %c0_i32 = arith.constant 0 : i32
    %c0_i32_0 = arith.constant 0 : i32
    return %c0_i32, %arg0 : i32, i32
  }
}

</mosaic_0001>

<llo_original>
// kernel: mlp_forward.1
$region0: #{mlp_forward.1}
  #allocation0 [shape = 'u32[]', space=smem, size = 0x4, offset = 0x4, fixed_abs, tag = 'smem constant byte address 0x4 - core index']
  #allocation1 [shape = 'u32[144,128]{1,0:T(1,128)}', space=vmem, size = 0x12000, scoped, tag = 'internal scratch']
  #allocation2 [shape = 'f32[1,1]{1,0:T(1,128)S(1)}', space=vmem, size = 0x200, scoped, tag = 'scoped memory for mlp_forward.1']
  %s0 = inlined_call_operand.vmem [shape: f32[8,128], index: 0, kind: input, shape index: {}]
  %s1 = inlined_call_operand.vmem [shape: f32[8,1], index: 1, kind: input, shape index: {}]
  %s2 = inlined_call_operand.<no memory space> [shape: f32[1,1], index: 2, kind: input, shape index: {}]
  %s3 = inlined_call_operand.vmem [shape: f32[1,128], index: 3, kind: output, shape index: {}]
  %s4 = sld [smem:[#allocation0]]
  $region22: #{mlp_forward.1} parent=0
    _
  %s6 = ssub.s32 1, %s4
  %s7 = scalar_select 0, %s6, %s4
  %v8 = vstv %s2
  %9 = vst [vmem:[#allocation2] sm:$0x1] %v8
  // Predicated region
  $region2: #{mlp_forward.1} parent=0 // pred_check
    _
  $region3: #{mlp_forward.1} parent=0 // pred_check_branch
    %11 = sbr.rel (0) target = $region5
  $region4: #{mlp_forward.1} parent=0 // pred_region
    _
  $region5: #{mlp_forward.1} parent=0 // pred_fallthru
    _
  // Predicated region
  $region6: #{mlp_forward.1} parent=0 // pred_check
    _
  $region7: #{mlp_forward.1} parent=0 // pred_check_branch
    %13 = sbr.rel (0) target = $region9
  $region8: #{mlp_forward.1} parent=0 // pred_region
    _
  $region9: #{mlp_forward.1} parent=0 // pred_fallthru
    _
  // Predicated region
  $region10: #{mlp_forward.1} parent=0 // pred_check
    _
  $region11: #{mlp_forward.1} parent=0 // pred_check_branch
    %15 = sbr.rel (0) target = $region13
  $region12: #{mlp_forward.1} parent=0 // pred_region
    _
  $region13: #{mlp_forward.1} parent=0 // pred_fallthru
    _
  %v16 = vld [vmem:[%s0] sm:$0xff]
  %v17 = vld [vmem:[%s1] sm:$0xff]
  %19 = vset.pattern.permute.xlu0 0
  %20 = vperm.xlu0 %19, %v17
  %v21 = vpop.permute.xlu0 %20
  %v23 = vmul.f32 %v16, %v21
  %v24 = vrot.slane %v23, 4
  %v25 = vadd.f32 %v23, %v24
  %v26 = vrot.slane %v25, 2
  %v27 = vadd.f32 %v25, %v26
  %v28 = vrot.slane %v27, 1
  %v29 = vadd.f32 %v27, %v28
  %v30 = vld [vmem:[#allocation2] sm:$0x1]
  %32 = vset.pattern.permute.xlu0 0
  %33 = vperm.xlu0 %32, %v30
  %v34 = vpop.permute.xlu0 %33
  %v36 = vlaneseq
  %v37 = vshrl.u32 %v36, 7
  %v38 = vsub.s32 0, %v37
  %v39 = vrot.slane %v34, %v38
  %v40 = vadd.f32 %v29, %v39
  %v41 = vmul.f32 %v40, 0.5
  %v42 = vtanh.pop %v41
  %v43 = vadd.f32 %v42, 1.0
  %v44 = vmul.f32 %v43, 0.5
  %45 = vst [vmem:[%s3] sm:$0x1] %v44
  // Predicated region
  $region14: #{mlp_forward.1} parent=0 // pred_check
    _
  $region15: #{mlp_forward.1} parent=0 // pred_check_branch
    %47 = sbr.rel (0) target = $region17
  $region16: #{mlp_forward.1} parent=0 // pred_region
    _
  $region17: #{mlp_forward.1} parent=0 // pred_fallthru
    _
  // Predicated region
  $region18: #{mlp_forward.1} parent=0 // pred_check
    _
  $region19: #{mlp_forward.1} parent=0 // pred_check_branch
    %49 = sbr.rel (0) target = $region21
  $region20: #{mlp_forward.1} parent=0 // pred_region
    _
  $region21: #{mlp_forward.1} parent=0 // pred_fallthru
    _

</llo_original>
